<compile_context>
chip_gen: v5e
topology: v5e:2x2
jax: 0.10.0
libtpu: 0.0.40
codegen_flags: <defaults>
</compile_context>

<pallas_src>
import functools

import jax
import jax.numpy as jnp
from jax.experimental import pallas as pl
from jax.experimental.pallas import tpu as pltpu


def _round_up(x, m):
    return ((x + m - 1) // m) * m


def _fused_mlp_kernel(x_ref, w1_ref, b1_ref, w2_ref, b2_ref, o_ref):
    """One (tm, Np) output tile; grid axis 1 reduces over hidden tiles.

    Per step:  h = relu(x_tile @ W1[:, h_tile] + b1[h_tile])   (f32 accumulation)
               o += h @ W2[h_tile, :]                           (accumulated in o_ref, f32)
    Bias b2 is added on the first reduction step.
    """
    h_idx = pl.program_id(1)

    w1 = w1_ref[...]
    # fc1 tile + ReLU, accumulated in f32 on the MXU.
    h = jnp.dot(x_ref[...], w1, preferred_element_type=jnp.float32)
    h = jnp.maximum(h + b1_ref[...], 0.0)

    # fc2 contribution of this hidden tile (cast back to the streaming dtype
    # so the MXU runs native bf16 when params are bf16).
    contrib = jnp.dot(h.astype(w1.dtype), w2_ref[...],
                      preferred_element_type=jnp.float32)

    @pl.when(h_idx == 0)
    def _():
        o_ref[...] = contrib + b2_ref[...]

    @pl.when(h_idx > 0)
    def _():
        o_ref[...] += contrib


@functools.partial(jax.jit, static_argnames=("tm", "th", "param_dtype"))
def fused_mlp(x, w1, b1, w2, b2, *, tm=128, th=256, param_dtype=jnp.bfloat16):
    """out = relu(x @ w1 + b1) @ w2 + b2, fused in one pallas_call.

    x: (M, K)   w1: (K, H)   b1: (H,)   w2: (H, N)   b2: (N,)   ->  (M, N) f32
    Arbitrary M/K/H/N are handled by zero-padding (exact: relu(0)=0 and zero
    weight rows/cols contribute nothing); the result is sliced back.
    """
    M, K = x.shape
    K2, H = w1.shape
    H2, N = w2.shape
    assert K == K2 and H == H2 and b1.shape == (H,) and b2.shape == (N,)

    # bf16 stream for weights/activations (f32 accumulation inside the kernel).
    x = x.astype(param_dtype)
    w1 = w1.astype(param_dtype)
    w2 = w2.astype(param_dtype)
    b1 = b1.astype(jnp.float32)
    b2 = b2.astype(jnp.float32)

    # TPU-friendly padded sizes.
    tm = min(tm, _round_up(M, 8))          # sublane-aligned batch tile
    Mp = _round_up(M, tm)
    Kp = _round_up(K, 128)                 # lane-aligned contraction dim
    th = min(th, _round_up(H, 128))        # 256-wide hidden tiles (MXU-native on v6e/v7x)
    Hp = _round_up(H, th)
    Np = _round_up(N, 128)                 # lane-dense (unmasked) output stores

    xp = jnp.pad(x, ((0, Mp - M), (0, Kp - K)))
    w1p = jnp.pad(w1, ((0, Kp - K), (0, Hp - H)))
    b1p = jnp.pad(b1, (0, Hp - H)).reshape(1, Hp)
    w2p = jnp.pad(w2, ((0, Hp - H), (0, Np - N)))
    b2p = jnp.pad(b2, (0, Np - N)).reshape(1, Np)

    grid = (Mp // tm, Hp // th)            # (batch tiles, hidden reduction tiles)

    out = pl.pallas_call(
        _fused_mlp_kernel,
        out_shape=jax.ShapeDtypeStruct((Mp, Np), jnp.float32),
        grid_spec=pltpu.PrefetchScalarGridSpec(
            num_scalar_prefetch=0,
            grid=grid,
            in_specs=[
                pl.BlockSpec((tm, Kp), lambda i, h: (i, 0)),   # x tile (full K)
                pl.BlockSpec((Kp, th), lambda i, h: (0, h)),   # W1 hidden-tile slab
                pl.BlockSpec((1, th), lambda i, h: (0, h)),    # b1 tile
                pl.BlockSpec((th, Np), lambda i, h: (h, 0)),   # W2 hidden-tile slab (full N)
                pl.BlockSpec((1, Np), lambda i, h: (0, 0)),    # b2
            ],
            out_specs=pl.BlockSpec((tm, Np), lambda i, h: (i, 0)),  # resident across h
        ),
        compiler_params=pltpu.CompilerParams(
            dimension_semantics=("parallel", "arbitrary"),
        ),
    )(xp, w1p, b1p, w2p, b2p)

    return out[:M, :N]


class MultiClassClassifierPallas:
    """fc1 -> ReLU -> fc2, matching torch.nn.Linear semantics.

    Weights are stored transposed ((in, out)) so the kernel computes y = x @ W + b.
    Init matches nn.Linear's default: uniform(-1/sqrt(fan_in), 1/sqrt(fan_in)).
    """

    def __init__(self, input_size, hidden_size, num_classes, key,
                 param_dtype=jnp.bfloat16):
        k1, k2, k3, k4 = jax.random.split(key, 4)
        lim1 = 1.0 / jnp.sqrt(jnp.float32(input_size))
        lim2 = 1.0 / jnp.sqrt(jnp.float32(hidden_size))
        self.w1 = jax.random.uniform(
            k1, (input_size, hidden_size), jnp.float32, -lim1, lim1)
        self.b1 = jax.random.uniform(k2, (hidden_size,), jnp.float32, -lim1, lim1)
        self.w2 = jax.random.uniform(
            k3, (hidden_size, num_classes), jnp.float32, -lim2, lim2)
        self.b2 = jax.random.uniform(k4, (num_classes,), jnp.float32, -lim2, lim2)
        self.param_dtype = param_dtype

    def __call__(self, x):
        return fused_mlp(x, self.w1, self.b1, self.w2, self.b2,
                         param_dtype=self.param_dtype)


if __name__ == "__main__":
    # Small shapes consistent with the module (Linear -> ReLU -> Linear).
    # Deliberately NOT multiples of 128 to exercise the padding path that the
    # real model sizes (9000 -> 8000 -> 4500) require.
    batch = 8
    input_size = 500
    hidden_size = 384
    num_classes = 100

    key = jax.random.PRNGKey(0)
    kx, kp = jax.random.split(key)
    x = jax.random.normal(kx, (batch, input_size), jnp.float32)

    model = MultiClassClassifierPallas(input_size, hidden_size, num_classes, kp)
    out = jax.block_until_ready(model(x))

    # Reference using the same bf16 parameter stream the kernel uses
    # (f32 accumulation), so tolerances stay tight.
    cd = model.param_dtype
    h_ref = jnp.maximum(
        jnp.dot(x.astype(cd), model.w1.astype(cd),
                preferred_element_type=jnp.float32) + model.b1, 0.0)
    ref = jnp.dot(h_ref.astype(cd), model.w2.astype(cd),
                  preferred_element_type=jnp.float32) + model.b2

    assert out.shape == (batch, num_classes)
    assert out.dtype == jnp.float32
    assert jnp.allclose(out, ref, atol=2e-2, rtol=2e-2), \
        float(jnp.max(jnp.abs(out - ref)))

    print("KERNEL_OK")
</pallas_src>

<mosaic_0001>
module attributes {stable_mosaic.version = 11 : i64} {
  func.func @_fused_mlp_kernel(%arg0: i32, %arg1: i32, %arg2: memref<8x512xbf16, #tpu.memory_space<vmem>>, %arg3: memref<512x256xbf16, #tpu.memory_space<vmem>>, %arg4: memref<1x256xf32, #tpu.memory_space<vmem>>, %arg5: memref<256x128xbf16, #tpu.memory_space<vmem>>, %arg6: memref<1x128xf32, #tpu.memory_space<vmem>>, %arg7: memref<8x128xf32, #tpu.memory_space<vmem>>) attributes {dimension_semantics = [#tpu.dimension_semantics<parallel>, #tpu.dimension_semantics<arbitrary>], iteration_bounds = array<i64: 1, 2>, scalar_prefetch = 0 : i64, scratch_operands = 0 : i64, tpu.core_type = #tpu.core_type<tc>, window_params = [{transform_indices = @transform_0, window_bounds = array<i64: 8, 512>}, {transform_indices = @transform_1, window_bounds = array<i64: 512, 256>}, {transform_indices = @transform_2, window_bounds = array<i64: 1, 256>}, {transform_indices = @transform_3, window_bounds = array<i64: 256, 128>}, {pipeline_mode = #tpu.pipeline_mode<synchronous>, transform_indices = @transform_4, window_bounds = array<i64: 1, 128>}, {transform_indices = @transform_5, window_bounds = array<i64: 8, 128>}]} {
    %c0 = arith.constant 0 : index
    %c0_0 = arith.constant 0 : index
    %0 = vector.load %arg3[%c0, %c0_0] : memref<512x256xbf16, #tpu.memory_space<vmem>>, vector<512x256xbf16>
    %c0_1 = arith.constant 0 : index
    %c0_2 = arith.constant 0 : index
    %1 = vector.load %arg2[%c0_1, %c0_2] : memref<8x512xbf16, #tpu.memory_space<vmem>>, vector<8x512xbf16>
    %cst = arith.constant dense<0.000000e+00> : vector<8x256xf32>
    %2 = tpu.matmul %1, %0, %cst {dimension_numbers = #tpu.dot_dimension_numbers<[1], [0], [0], [1], [0, 0, 1, 1], [], []>} : vector<8x512xbf16>, vector<512x256xbf16>, vector<8x256xf32> -> vector<8x256xf32>
    %c0_3 = arith.constant 0 : index
    %c0_4 = arith.constant 0 : index
    %3 = vector.load %arg4[%c0_3, %c0_4] : memref<1x256xf32, #tpu.memory_space<vmem>>, vector<1x256xf32>
    %4 = vector.broadcast %3 : vector<1x256xf32> to vector<8x256xf32>
    %5 = arith.addf %2, %4 : vector<8x256xf32>
    %cst_5 = arith.constant 0.000000e+00 : f32
    %6 = vector.broadcast %cst_5 : f32 to vector<8x256xf32>
    %7 = arith.maximumf %5, %6 : vector<8x256xf32>
    %8 = arith.truncf %7 : vector<8x256xf32> to vector<8x256xbf16>
    %c0_6 = arith.constant 0 : index
    %c0_7 = arith.constant 0 : index
    %9 = vector.load %arg5[%c0_6, %c0_7] : memref<256x128xbf16, #tpu.memory_space<vmem>>, vector<256x128xbf16>
    %cst_8 = arith.constant dense<0.000000e+00> : vector<8x128xf32>
    %10 = tpu.matmul %8, %9, %cst_8 {dimension_numbers = #tpu.dot_dimension_numbers<[1], [0], [0], [1], [0, 0, 1, 1], [], []>} : vector<8x256xbf16>, vector<256x128xbf16>, vector<8x128xf32> -> vector<8x128xf32>
    %c0_i32 = arith.constant 0 : i32
    %11 = arith.cmpi eq, %arg1, %c0_i32 : i32
    %12 = arith.extui %11 : i1 to i32
    %c0_i32_9 = arith.constant 0 : i32
    %13 = arith.cmpi ne, %12, %c0_i32_9 : i32
    scf.if %13 {
      %c0_12 = arith.constant 0 : index
      %c0_13 = arith.constant 0 : index
      %17 = vector.load %arg6[%c0_12, %c0_13] : memref<1x128xf32, #tpu.memory_space<vmem>>, vector<1x128xf32>
      %18 = vector.broadcast %17 : vector<1x128xf32> to vector<8x128xf32>
      %19 = arith.addf %10, %18 : vector<8x128xf32>
      %c0_14 = arith.constant 0 : index
      %c0_15 = arith.constant 0 : index
      %20 = vector.load %arg7[%c0_14, %c0_15] : memref<8x128xf32, #tpu.memory_space<vmem>>, vector<8x128xf32>
      tpu.vector_store %arg7[%c0_14, %c0_15], %19 {strides = array<i32>} : memref<8x128xf32, #tpu.memory_space<vmem>>, vector<8x128xf32>,
    } else {
    }
    %c0_i32_10 = arith.constant 0 : i32
    %14 = arith.cmpi sgt, %arg1, %c0_i32_10 : i32
    %15 = arith.extui %14 : i1 to i32
    %c0_i32_11 = arith.constant 0 : i32
    %16 = arith.cmpi ne, %15, %c0_i32_11 : i32
    scf.if %16 {
      %c0_12 = arith.constant 0 : index
      %c0_13 = arith.constant 0 : index
      %17 = vector.load %arg7[%c0_12, %c0_13] : memref<8x128xf32, #tpu.memory_space<vmem>>, vector<8x128xf32>
      %18 = arith.addf %17, %10 : vector<8x128xf32>
      %c0_14 = arith.constant 0 : index
      %c0_15 = arith.constant 0 : index
      %19 = vector.load %arg7[%c0_14, %c0_15] : memref<8x128xf32, #tpu.memory_space<vmem>>, vector<8x128xf32>
      tpu.vector_store %arg7[%c0_14, %c0_15], %18 {strides = array<i32>} : memref<8x128xf32, #tpu.memory_space<vmem>>, vector<8x128xf32>,
    } else {
    }
    return
  }
  func.func @transform_0(%arg0: i32, %arg1: i32) -> (i32, i32) {
    %c0_i32 = arith.constant 0 : i32
    %c0_i32_0 = arith.constant 0 : i32
    return %arg0, %c0_i32 : i32, i32
  }
  func.func @transform_1(%arg0: i32, %arg1: i32) -> (i32, i32) {
    %c0_i32 = arith.constant 0 : i32
    %c0_i32_0 = arith.constant 0 : i32
    return %c0_i32, %arg1 : i32, i32
  }
  func.func @transform_2(%arg0: i32, %arg1: i32) -> (i32, i32) {
    %c0_i32 = arith.constant 0 : i32
    %c0_i32_0 = arith.constant 0 : i32
    return %c0_i32, %arg1 : i32, i32
  }
  func.func @transform_3(%arg0: i32, %arg1: i32) -> (i32, i32) {
    %c0_i32 = arith.constant 0 : i32
    %c0_i32_0 = arith.constant 0 : i32
    return %arg1, %c0_i32 : i32, i32
  }
  func.func @transform_4(%arg0: i32, %arg1: i32) -> (i32, i32) {
    %c0_i32 = arith.constant 0 : i32
    %c0_i32_0 = arith.constant 0 : i32
    %c0_i32_1 = arith.constant 0 : i32
    return %c0_i32, %c0_i32_0 : i32, i32
  }
  func.func @transform_5(%arg0: i32, %arg1: i32) -> (i32, i32) {
    %c0_i32 = arith.constant 0 : i32
    %c0_i32_0 = arith.constant 0 : i32
    return %arg0, %c0_i32 : i32, i32
  }
}

</mosaic_0001>

<llo_original>
// kernel: fused_mlp.1
$region0: #{fused_mlp.1}
  #allocation0 [shape = 'u32[]', space=smem, size = 0x4, offset = 0x4, fixed_abs, tag = 'smem constant byte address 0x4 - core index']
  #allocation1 [shape = 'u32[72,128]{1,0:T(1,128)}', space=vmem, size = 0x9000, scoped, tag = 'internal scratch']
  %s0 = inlined_call_operand.vmem [shape: bf16[8,512], index: 0, kind: input, shape index: {}]
  %s1 = inlined_call_operand.vmem [shape: bf16[512,512], index: 1, kind: input, shape index: {}]
  %s2 = inlined_call_operand.vmem [shape: f32[1,512], index: 2, kind: input, shape index: {}]
  %s3 = inlined_call_operand.vmem [shape: bf16[512,128], index: 3, kind: input, shape index: {}]
  %s4 = inlined_call_operand.vmem [shape: f32[1,128], index: 4, kind: input, shape index: {}]
  %s5 = inlined_call_operand.hbm [shape: f32[8,128], index: 5, kind: output, shape index: {}]
  %s6 = sld [smem:[#allocation0]]
  $region99: #{fused_mlp.1} parent=0
    _
  %s8 = ssub.s32 1, %s6
  %s9 = scalar_select 0, %s8, %s6
  $region1: #{fused_mlp.1} parent=0
    #allocation2 [shape = 'u8[524288]{0}', space=vmem, size = 0x80000, scoped, tag = 'input window, operand 1']
    #allocation3 [shape = 'u8[4096]{0}', space=vmem, size = 0x1000, scoped, tag = 'output window, operand 0, single buffered']
    #allocation4 [shape = 's32[2]{0}', space=sflag, size = 0x8, scoped, tag = 'scoped memory for fused_mlp.1']
    %10 = vsyncpa [#allocation4], 0
    loop: start=0, step=1, limit=4
    $region2: #{fused_mlp.1} parent=1 // loop_pre_header
      _
    $region3: #{fused_mlp.1} parent=1 // loop_header
      %s12 = sphi 0, %s16
      %p13 = scmp.ge.s32.totalorder %s12, 4
      %s19 = sphi 0, %s31
      %s20 = sphi 0, %s27
      %s21 = sphi 0, %s19
      %s22 = sphi 0, %s20
      %s23 = sphi 0, %s21
      %s24 = sphi 0, %s22
      %s34 = sphi 0, %s36
      %s37 = sphi 0, %s34
      %s38 = sphi 0, %s37
      %s54 = sphi 0, %s38
      %s60 = sphi 0, %s62
      %s63 = sphi 0, %s60
      %s64 = sphi 0, %s63
      %s80 = sphi 0, %s64
      %s86 = sphi 0, %s88
      %s89 = sphi 0, %s86
      %s90 = sphi 0, %s89
      %s106 = sphi 0, %s90
      %s112 = sphi 0, %s114
      %s115 = sphi 0, %s112
      %s116 = sphi 0, %s115
      %s132 = sphi 0, %s116
      %s136 = sphi 0, %s136
      %s138 = sphi 0, %s136
      %s139 = sphi 0, %s138
      %s153 = sphi 0, %s139
      %s159 = sphi 0, %s161
      %s162 = sphi 0, %s159
      %s163 = sphi 0, %s162
      %s179 = sphi 0, %s163
    $region4: #{fused_mlp.1} parent=1 // loop_header_branch
      %15 = sbr.rel (%p13) target = $region8
    $region5: #{fused_mlp.1} parent=1 // loop_body
      %s17 = ssub.s32 %s12, 1
      %s18 = ssub.s32 %s12, 2
      %s25 = sadd.s32 1, %s20
      %p26 = scmp.ge.s32.totalorder %s25, 2
      %s27 = scalar_select %p26, 0, %s25
      %s28 = sadd.s32 1, %s19
      %s29 = scalar_select %p26, %s28, %s19
      %p30 = scmp.ge.s32.totalorder %s29, 1
      %s31 = scalar_select %p30, 0, %s29
      %s32 = ssub.s32 %s19, %s31
      %p33 = scmp.eq.s32.totalorder %s32, 0
      %s35 = sadd.s32 %s34, 1
      %s36 = scalar_select %p33, %s34, %s35
      %p39 = pneg %p33
      %p40 = scmp.eq.s32.totalorder %s12, 1
      %p41 = por %p39, %p40
      %p42 = scmp.ne.s32.totalorder %s34, %s37
      %p43 = scmp.eq.s32.totalorder %s12, 0
      %p44 = por %p42, %p43
      %p45 = scmp.ne.s32.totalorder %s34, %s37
      %p46 = scmp.eq.s32.totalorder %s17, 1
      %p47 = por %p45, %p46
      %p48 = scmp.ne.s32.totalorder %s37, %s38
      %p49 = scmp.eq.s32.totalorder %s17, 0
      %p50 = por %p48, %p49
      %p51 = scmp.ne.s32.totalorder %s37, %s38
      %p52 = scmp.eq.s32.totalorder %s18, 1
      %p53 = por %p51, %p52
      %p55 = scmp.ne.s32.totalorder %s38, %s54
      %p56 = scmp.eq.s32.totalorder %s18, 0
      %p57 = por %p55, %p56
      %s58 = ssub.s32 %s20, %s27
      %p59 = scmp.eq.s32.totalorder %s58, 0
      %s61 = sadd.s32 %s60, 1
      %s62 = scalar_select %p59, %s60, %s61
      %p65 = pneg %p59
      %p66 = scmp.eq.s32.totalorder %s12, 1
      %p67 = por %p65, %p66
      %p68 = scmp.ne.s32.totalorder %s60, %s63
      %p69 = scmp.eq.s32.totalorder %s12, 0
      %p70 = por %p68, %p69
      %p71 = scmp.ne.s32.totalorder %s60, %s63
      %p72 = scmp.eq.s32.totalorder %s17, 1
      %p73 = por %p71, %p72
      %p74 = scmp.ne.s32.totalorder %s63, %s64
      %p75 = scmp.eq.s32.totalorder %s17, 0
      %p76 = por %p74, %p75
      %p77 = scmp.ne.s32.totalorder %s63, %s64
      %p78 = scmp.eq.s32.totalorder %s18, 1
      %p79 = por %p77, %p78
      %p81 = scmp.ne.s32.totalorder %s64, %s80
      %p82 = scmp.eq.s32.totalorder %s18, 0
      %p83 = por %p81, %p82
      %s84 = ssub.s32 %s20, %s27
      %p85 = scmp.eq.s32.totalorder %s84, 0
      %s87 = sadd.s32 %s86, 1
      %s88 = scalar_select %p85, %s86, %s87
      %p91 = pneg %p85
      %p92 = scmp.eq.s32.totalorder %s12, 1
      %p93 = por %p91, %p92
      %p94 = scmp.ne.s32.totalorder %s86, %s89
      %p95 = scmp.eq.s32.totalorder %s12, 0
      %p96 = por %p94, %p95
      %p97 = scmp.ne.s32.totalorder %s86, %s89
      %p98 = scmp.eq.s32.totalorder %s17, 1
      %p99 = por %p97, %p98
      %p100 = scmp.ne.s32.totalorder %s89, %s90
      %p101 = scmp.eq.s32.totalorder %s17, 0
      %p102 = por %p100, %p101
      %p103 = scmp.ne.s32.totalorder %s89, %s90
      %p104 = scmp.eq.s32.totalorder %s18, 1
      %p105 = por %p103, %p104
      %p107 = scmp.ne.s32.totalorder %s90, %s106
      %p108 = scmp.eq.s32.totalorder %s18, 0
      %p109 = por %p107, %p108
      %s110 = ssub.s32 %s20, %s27
      %p111 = scmp.eq.s32.totalorder %s110, 0
      %s113 = sadd.s32 %s112, 1
      %s114 = scalar_select %p111, %s112, %s113
      %p117 = pneg %p111
      %p118 = scmp.eq.s32.totalorder %s12, 1
      %p119 = por %p117, %p118
      %p120 = scmp.ne.s32.totalorder %s112, %s115
      %p121 = scmp.eq.s32.totalorder %s12, 0
      %p122 = por %p120, %p121
      %p123 = scmp.ne.s32.totalorder %s112, %s115
      %p124 = scmp.eq.s32.totalorder %s17, 1
      %p125 = por %p123, %p124
      %p126 = scmp.ne.s32.totalorder %s115, %s116
      %p127 = scmp.eq.s32.totalorder %s17, 0
      %p128 = por %p126, %p127
      %p129 = scmp.ne.s32.totalorder %s115, %s116
      %p130 = scmp.eq.s32.totalorder %s18, 1
      %p131 = por %p129, %p130
      %p133 = scmp.ne.s32.totalorder %s116, %s132
      %p134 = scmp.eq.s32.totalorder %s18, 0
      %p135 = por %p133, %p134
      %s137 = sadd.s32 %s136, 1
      %p140 = scmp.eq.s32.totalorder %s12, 1
      %p141 = scmp.ne.s32.totalorder %s136, %s138
      %p142 = scmp.eq.s32.totalorder %s12, 0
      %p143 = por %p141, %p142
      %p144 = scmp.ne.s32.totalorder %s136, %s138
      %p145 = scmp.eq.s32.totalorder %s17, 1
      %p146 = por %p144, %p145
      %p147 = scmp.ne.s32.totalorder %s138, %s139
      %p148 = scmp.eq.s32.totalorder %s17, 0
      %p149 = por %p147, %p148
      %p150 = scmp.ne.s32.totalorder %s138, %s139
      %p151 = scmp.eq.s32.totalorder %s18, 1
      %p152 = por %p150, %p151
      %p154 = scmp.ne.s32.totalorder %s139, %s153
      %p155 = scmp.eq.s32.totalorder %s18, 0
      %p156 = por %p154, %p155
      %s157 = ssub.s32 %s19, %s31
      %p158 = scmp.eq.s32.totalorder %s157, 0
      %s160 = sadd.s32 %s159, 1
      %s161 = scalar_select %p158, %s159, %s160
      %p164 = pneg %p158
      %p165 = scmp.eq.s32.totalorder %s12, 1
      %p166 = por %p164, %p165
      %p167 = scmp.ne.s32.totalorder %s159, %s162
      %p168 = scmp.eq.s32.totalorder %s12, 0
      %p169 = por %p167, %p168
      %p170 = scmp.ne.s32.totalorder %s159, %s162
      %p171 = scmp.eq.s32.totalorder %s17, 1
      %p172 = por %p170, %p171
      %p173 = scmp.ne.s32.totalorder %s162, %s163
      %p174 = scmp.eq.s32.totalorder %s17, 0
      %p175 = por %p173, %p174
      %p176 = scmp.ne.s32.totalorder %s162, %s163
      %p177 = scmp.eq.s32.totalorder %s18, 1
      %p178 = por %p176, %p177
      %p180 = scmp.ne.s32.totalorder %s163, %s179
      %p181 = scmp.eq.s32.totalorder %s18, 0
      %p182 = por %p180, %p181
      %p183 = scmp.le.s32.totalorder 1, %s12
      %p184 = scmp.lt.s32.totalorder %s12, 3
      %p185 = pnand %p183, %p184
      %p186 = pneg %p185
      // Predicated region
      $region9: #{fused_mlp.1} parent=5 // pred_check
        _
      $region10: #{fused_mlp.1} parent=5 // pred_check_branch
        %188 = sbr.rel (%p185) target = $region12
      $region11: #{fused_mlp.1} parent=5 // pred_region
        %s189 = ssub.s32 %s12, 1
        // Predicated region
        $region13: #{fused_mlp.1} parent=11 // pred_check
          %p190 = pneg %p50
        $region14: #{fused_mlp.1} parent=11 // pred_check_branch
          %192 = sbr.rel (%p190) target = $region16
        $region15: #{fused_mlp.1} parent=11 // pred_region
          %p193 = scmp.lt.s32.totalorder %s21, 0
          %s194 = scalar_select %p193, %s21, 0
          %s195 = smul.addr %s194, 4
          %s196 = smul.addr %s195, 4
          %s197 = scalar_lea.vmem %s0, %s196
        $region16: #{fused_mlp.1} parent=11 // pred_fallthru
          _
        // Predicated region
        $region17: #{fused_mlp.1} parent=11 // pred_check
          %p198 = pneg %p149
        $region18: #{fused_mlp.1} parent=11 // pred_check_branch
          %200 = sbr.rel (%p198) target = $region20
        $region19: #{fused_mlp.1} parent=11 // pred_region
          _
        $region20: #{fused_mlp.1} parent=11 // pred_fallthru
          _
      $region12: #{fused_mlp.1} parent=5 // pred_fallthru
        _
      %p201 = scmp.lt.s32.totalorder %s12, 2
      // Predicated region
      $region21: #{fused_mlp.1} parent=5 // pred_check
        %p202 = pneg %p201
      $region22: #{fused_mlp.1} parent=5 // pred_check_branch
        %204 = sbr.rel (%p202) target = $region24
      $region23: #{fused_mlp.1} parent=5 // pred_region
        // Predicated region
        $region25: #{fused_mlp.1} parent=23 // pred_check
          %p205 = pneg %p70
        $region26: #{fused_mlp.1} parent=23 // pred_check_branch
          %207 = sbr.rel (%p205) target = $region28
        $region27: #{fused_mlp.1} parent=23 // pred_region
          %s208 = sand.u32 %s60, 1
          %s209 = sand.u32 %s60, 1
          %s210 = smul.addr %s209, 512
          %s211 = scalar_lea.vmem [#allocation2], %s210
          %s212 = smul.u32 2, %s20
          %s213 = smul.addr %s212, 4
          %s214 = scalar_lea.vmem %s1, %s213
          // Predicated region
          $region29: #{fused_mlp.1} parent=27 // pred_check
            _
          $region30: #{fused_mlp.1} parent=27 // pred_check_branch
            %216 = sbr.rel (0) target = $region32
          $region31: #{fused_mlp.1} parent=27 // pred_region
            // Predicated region
            $region33: #{fused_mlp.1} parent=31 // pred_check
              _
            $region34: #{fused_mlp.1} parent=31 // pred_check_branch
              %218 = sbr.rel (0) target = $region36
            $region35: #{fused_mlp.1} parent=31 // pred_region
              // Predicated region
              $region48: #{fused_mlp.1} parent=35 // pred_check
                _
              $region49: #{fused_mlp.1} parent=35 // pred_check_branch
                %360 = sbr.rel (0) target = $region51
              $region50: #{fused_mlp.1} parent=35 // pred_region
                loop: start=0, step=1, limit=1
                $region52: #{fused_mlp.1} parent=50 // loop_pre_header
                  _
                $region53: #{fused_mlp.1} parent=50 // loop_header
                  %s362 = sphi 0, %s366
                  %p363 = scmp.ge.s32.totalorder %s362, 1
                  %s367 = sphi %s214, %s214
                  %s368 = sphi %s211, %s211
                $region54: #{fused_mlp.1} parent=50 // loop_header_branch
                  %365 = sbr.rel (%p363) target = $region58
                $region55: #{fused_mlp.1} parent=50 // loop_body
                  %v369 = vld [vmem:[%s367] sm:$0xff]
                  %370 = vst [vmem:[%s368] sm:$0xff] %v369
                  %v371 = vld [vmem:[%s367 + $0x10] sm:$0xff]
                  %372 = vst [vmem:[%s368 + $0x8] sm:$0xff] %v371
                  %v373 = vld [vmem:[%s367 + $0x20] sm:$0xff]
                  %374 = vst [vmem:[%s368 + $0x10] sm:$0xff] %v373
                  %v375 = vld [vmem:[%s367 + $0x30] sm:$0xff]
                  %376 = vst [vmem:[%s368 + $0x18] sm:$0xff] %v375
                  %v377 = vld [vmem:[%s367 + $0x40] sm:$0xff]
                  %378 = vst [vmem:[%s368 + $0x20] sm:$0xff] %v377
                  %v379 = vld [vmem:[%s367 + $0x50] sm:$0xff]
                  %380 = vst [vmem:[%s368 + $0x28] sm:$0xff] %v379
                  %v381 = vld [vmem:[%s367 + $0x60] sm:$0xff]
                  %382 = vst [vmem:[%s368 + $0x30] sm:$0xff] %v381
                  %v383 = vld [vmem:[%s367 + $0x70] sm:$0xff]
                  %384 = vst [vmem:[%s368 + $0x38] sm:$0xff] %v383
                  %v385 = vld [vmem:[%s367 + $0x80] sm:$0xff]
                  %386 = vst [vmem:[%s368 + $0x40] sm:$0xff] %v385
                  %v387 = vld [vmem:[%s367 + $0x90] sm:$0xff]
                  %388 = vst [vmem:[%s368 + $0x48] sm:$0xff] %v387
                  %v389 = vld [vmem:[%s367 + $0xa0] sm:$0xff]
                  %390 = vst [vmem:[%s368 + $0x50] sm:$0xff] %v389
                  %v391 = vld [vmem:[%s367 + $0xb0] sm:$0xff]
                  %392 = vst [vmem:[%s368 + $0x58] sm:$0xff] %v391
                  %v393 = vld [vmem:[%s367 + $0xc0] sm:$0xff]
                  %394 = vst [vmem:[%s368 + $0x60] sm:$0xff] %v393
                  %v395 = vld [vmem:[%s367 + $0xd0] sm:$0xff]
                  %396 = vst [vmem:[%s368 + $0x68] sm:$0xff] %v395
                  %v397 = vld [vmem:[%s367 + $0xe0] sm:$0xff]
                  %398 = vst [vmem:[%s368 + $0x70] sm:$0xff] %v397
                  %v399 = vld [vmem:[%s367 + $0xf0] sm:$0xff]
                  %400 = vst [vmem:[%s368 + $0x78] sm:$0xff] %v399
                  %v401 = vld [vmem:[%s367 + $0x100] sm:$0xff]
                  %402 = vst [vmem:[%s368 + $0x80] sm:$0xff] %v401
                  %v403 = vld [vmem:[%s367 + $0x110] sm:$0xff]
                  %404 = vst [vmem:[%s368 + $0x88] sm:$0xff] %v403
                  %v405 = vld [vmem:[%s367 + $0x120] sm:$0xff]
                  %406 = vst [vmem:[%s368 + $0x90] sm:$0xff] %v405
                  %v407 = vld [vmem:[%s367 + $0x130] sm:$0xff]
                  %408 = vst [vmem:[%s368 + $0x98] sm:$0xff] %v407
                  %v409 = vld [vmem:[%s367 + $0x140] sm:$0xff]
                  %410 = vst [vmem:[%s368 + $0xa0] sm:$0xff] %v409
                  %v411 = vld [vmem:[%s367 + $0x150] sm:$0xff]
                  %412 = vst [vmem:[%s368 + $0xa8] sm:$0xff] %v411
                  %v413 = vld [vmem:[%s367 + $0x160] sm:$0xff]
                  %414 = vst [vmem:[%s368 + $0xb0] sm:$0xff] %v413
                  %v415 = vld [vmem:[%s367 + $0x170] sm:$0xff]
                  %416 = vst [vmem:[%s368 + $0xb8] sm:$0xff] %v415
                  %v417 = vld [vmem:[%s367 + $0x180] sm:$0xff]
                  %418 = vst [vmem:[%s368 + $0xc0] sm:$0xff] %v417
                  %v419 = vld [vmem:[%s367 + $0x190] sm:$0xff]
                  %420 = vst [vmem:[%s368 + $0xc8] sm:$0xff] %v419
                  %v421 = vld [vmem:[%s367 + $0x1a0] sm:$0xff]
                  %422 = vst [vmem:[%s368 + $0xd0] sm:$0xff] %v421
                  %v423 = vld [vmem:[%s367 + $0x1b0] sm:$0xff]
                  %424 = vst [vmem:[%s368 + $0xd8] sm:$0xff] %v423
                  %v425 = vld [vmem:[%s367 + $0x1c0] sm:$0xff]
                  %426 = vst [vmem:[%s368 + $0xe0] sm:$0xff] %v425
                  %v427 = vld [vmem:[%s367 + $0x1d0] sm:$0xff]
                  %428 = vst [vmem:[%s368 + $0xe8] sm:$0xff] %v427
                  %v429 = vld [vmem:[%s367 + $0x1e0] sm:$0xff]
                  %430 = vst [vmem:[%s368 + $0xf0] sm:$0xff] %v429
                  %v431 = vld [vmem:[%s367 + $0x1f0] sm:$0xff]
                  %432 = vst [vmem:[%s368 + $0xf8] sm:$0xff] %v431
                  %v433 = vld [vmem:[%s367 + $0x200] sm:$0xff]
                  %434 = vst [vmem:[%s368 + $0x100] sm:$0xff] %v433
                  %v435 = vld [vmem:[%s367 + $0x210] sm:$0xff]
                  %436 = vst [vmem:[%s368 + $0x108] sm:$0xff] %v435
                  %v437 = vld [vmem:[%s367 + $0x220] sm:$0xff]
                  %438 = vst [vmem:[%s368 + $0x110] sm:$0xff] %v437
                  %v439 = vld [vmem:[%s367 + $0x230] sm:$0xff]
                  %440 = vst [vmem:[%s368 + $0x118] sm:$0xff] %v439
                  %v441 = vld [vmem:[%s367 + $0x240] sm:$0xff]
                  %442 = vst [vmem:[%s368 + $0x120] sm:$0xff] %v441
                  %v443 = vld [vmem:[%s367 + $0x250] sm:$0xff]
                  %444 = vst [vmem:[%s368 + $0x128] sm:$0xff] %v443
                  %v445 = vld [vmem:[%s367 + $0x260] sm:$0xff]
                  %446 = vst [vmem:[%s368 + $0x130] sm:$0xff] %v445
                  %v447 = vld [vmem:[%s367 + $0x270] sm:$0xff]
                  %448 = vst [vmem:[%s368 + $0x138] sm:$0xff] %v447
                  %v449 = vld [vmem:[%s367 + $0x280] sm:$0xff]
                  %450 = vst [vmem:[%s368 + $0x140] sm:$0xff] %v449
                  %v451 = vld [vmem:[%s367 + $0x290] sm:$0xff]
                  %452 = vst [vmem:[%s368 + $0x148] sm:$0xff] %v451
                  %v453 = vld [vmem:[%s367 + $0x2a0] sm:$0xff]
                  %454 = vst [vmem:[%s368 + $0x150] sm:$0xff] %v453
                  %v455 = vld [vmem:[%s367 + $0x2b0] sm:$0xff]
                  %456 = vst [vmem:[%s368 + $0x158] sm:$0xff] %v455
                  %v457 = vld [vmem:[%s367 + $0x2c0] sm:$0xff]
                  %458 = vst [vmem:[%s368 + $0x160] sm:$0xff] %v457
                  %v459 = vld [vmem:[%s367 + $0x2d0] sm:$0xff]
                  %460 = vst [vmem:[%s368 + $0x168] sm:$0xff] %v459
                  %v461 = vld [vmem:[%s367 + $0x2e0] sm:$0xff]
                  %462 = vst [vmem:[%s368 + $0x170] sm:$0xff] %v461
                  %v463 = vld [vmem:[%s367 + $0x2f0] sm:$0xff]
                  %464 = vst [vmem:[%s368 + $0x178] sm:$0xff] %v463
                  %v465 = vld [vmem:[%s367 + $0x300] sm:$0xff]
                  %466 = vst [vmem:[%s368 + $0x180] sm:$0xff] %v465
                  %v467 = vld [vmem:[%s367 + $0x310] sm:$0xff]
                  %468 = vst [vmem:[%s368 + $0x188] sm:$0xff] %v467
                  %v469 = vld [vmem:[%s367 + $0x320] sm:$0xff]
                  %470 = vst [vmem:[%s368 + $0x190] sm:$0xff] %v469
                  %v471 = vld [vmem:[%s367 + $0x330] sm:$0xff]
                  %472 = vst [vmem:[%s368 + $0x198] sm:$0xff] %v471
                  %v473 = vld [vmem:[%s367 + $0x340] sm:$0xff]
                  %474 = vst [vmem:[%s368 + $0x1a0] sm:$0xff] %v473
                  %v475 = vld [vmem:[%s367 + $0x350] sm:$0xff]
                  %476 = vst [vmem:[%s368 + $0x1a8] sm:$0xff] %v475
                  %v477 = vld [vmem:[%s367 + $0x360] sm:$0xff]
                  %478 = vst [vmem:[%s368 + $0x1b0] sm:$0xff] %v477
                  %v479 = vld [vmem:[%s367 + $0x370] sm:$0xff]
                  %480 = vst [vmem:[%s368 + $0x1b8] sm:$0xff] %v479
                  %v481 = vld [vmem:[%s367 + $0x380] sm:$0xff]
                  %482 = vst [vmem:[%s368 + $0x1c0] sm:$0xff] %v481
                  %v483 = vld [vmem:[%s367 + $0x390] sm:$0xff]
                  %484 = vst [vmem:[%s368 + $0x1c8] sm:$0xff] %v483
                  %v485 = vld [vmem:[%s367 + $0x3a0] sm:$0xff]
                  %486 = vst [vmem:[%s368 + $0x1d0] sm:$0xff] %v485
                  %v487 = vld [vmem:[%s367 + $0x3b0] sm:$0xff]
                  %488 = vst [vmem:[%s368 + $0x1d8] sm:$0xff] %v487
                  %v489 = vld [vmem:[%s367 + $0x3c0] sm:$0xff]
                  %490 = vst [vmem:[%s368 + $0x1e0] sm:$0xff] %v489
                  %v491 = vld [vmem:[%s367 + $0x3d0] sm:$0xff]
                  %492 = vst [vmem:[%s368 + $0x1e8] sm:$0xff] %v491
                  %v493 = vld [vmem:[%s367 + $0x3e0] sm:$0xff]
                  %494 = vst [vmem:[%s368 + $0x1f0] sm:$0xff] %v493
                  %v495 = vld [vmem:[%s367 + $0x3f0] sm:$0xff]
                  %496 = vst [vmem:[%s368 + $0x1f8] sm:$0xff] %v495
                $region56: #{fused_mlp.1} parent=50 // loop_footer
                  %s366 = sadd.s32 1, %s362
                $region57: #{fused_mlp.1} parent=50 // loop_footer_branch
                  %361 = sbr.rel target = $region53
                $region58: #{fused_mlp.1} parent=50 // loop_exit
                  _
              $region51: #{fused_mlp.1} parent=35 // pred_fallthru
                _
              // Predicated region
              $region59: #{fused_mlp.1} parent=35 // pred_check
                _
              $region60: #{fused_mlp.1} parent=35 // pred_check_branch
                %498 = sbr.rel target = $region62
              $region61: #{fused_mlp.1} parent=35 // pred_region
                _
              $region62: #{fused_mlp.1} parent=35 // pred_fallthru
                _
            $region36: #{fused_mlp.1} parent=31 // pred_fallthru
              _
            // Predicated region
            $region37: #{fused_mlp.1} parent=31 // pred_check
              _
            $region38: #{fused_mlp.1} parent=31 // pred_check_branch
              %220 = sbr.rel target = $region40
            $region39: #{fused_mlp.1} parent=31 // pred_region
              %s222 = ssub.s32 256, 1
              loop: start=0, step=1, limit=1
              $region41: #{fused_mlp.1} parent=39 // loop_pre_header
                _
              $region42: #{fused_mlp.1} parent=39 // loop_header
                %s224 = sphi 0, %s228
                %p225 = scmp.ge.s32.totalorder %s224, 1
                %s229 = sphi %s214, %s214
                %s230 = sphi %s211, %s211
              $region43: #{fused_mlp.1} parent=39 // loop_header_branch
                %227 = sbr.rel (%p225) target = $region47
              $region44: #{fused_mlp.1} parent=39 // loop_body
                %v231 = vld [vmem:[%s229] sm:%s222]
                %232 = vst [vmem:[%s230] sm:%s222] %v231
                %v233 = vld [vmem:[%s229 + $0x10] sm:%s222]
                %234 = vst [vmem:[%s230 + $0x8] sm:%s222] %v233
                %v235 = vld [vmem:[%s229 + $0x20] sm:%s222]
                %236 = vst [vmem:[%s230 + $0x10] sm:%s222] %v235
                %v237 = vld [vmem:[%s229 + $0x30] sm:%s222]
                %238 = vst [vmem:[%s230 + $0x18] sm:%s222] %v237
                %v239 = vld [vmem:[%s229 + $0x40] sm:%s222]
                %240 = vst [vmem:[%s230 + $0x20] sm:%s222] %v239
                %v241 = vld [vmem:[%s229 + $0x50] sm:%s222]
                %242 = vst [vmem:[%s230 + $0x28] sm:%s222] %v241
                %v243 = vld [vmem:[%s229 + $0x60] sm:%s222]
                %244 = vst [vmem:[%s230 + $0x30] sm:%s222] %v243
                %v245 = vld [vmem:[%s229 + $0x70] sm:%s222]
                %246 = vst [vmem:[%s230 + $0x38] sm:%s222] %v245
                %v247 = vld [vmem:[%s229 + $0x80] sm:%s222]
                %248 = vst [vmem:[%s230 + $0x40] sm:%s222] %v247
                %v249 = vld [vmem:[%s229 + $0x90] sm:%s222]
                %250 = vst [vmem:[%s230 + $0x48] sm:%s222] %v249
                %v251 = vld [vmem:[%s229 + $0xa0] sm:%s222]
                %252 = vst [vmem:[%s230 + $0x50] sm:%s222] %v251
                %v253 = vld [vmem:[%s229 + $0xb0] sm:%s222]
                %254 = vst [vmem:[%s230 + $0x58] sm:%s222] %v253
                %v255 = vld [vmem:[%s229 + $0xc0] sm:%s222]
                %256 = vst [vmem:[%s230 + $0x60] sm:%s222] %v255
                %v257 = vld [vmem:[%s229 + $0xd0] sm:%s222]
                %258 = vst [vmem:[%s230 + $0x68] sm:%s222] %v257
                %v259 = vld [vmem:[%s229 + $0xe0] sm:%s222]
                %260 = vst [vmem:[%s230 + $0x70] sm:%s222] %v259
                %v261 = vld [vmem:[%s229 + $0xf0] sm:%s222]
                %262 = vst [vmem:[%s230 + $0x78] sm:%s222] %v261
                %v263 = vld [vmem:[%s229 + $0x100] sm:%s222]
                %264 = vst [vmem:[%s230 + $0x80] sm:%s222] %v263
                %v265 = vld [vmem:[%s229 + $0x110] sm:%s222]
                %266 = vst [vmem:[%s230 + $0x88] sm:%s222] %v265
                %v267 = vld [vmem:[%s229 + $0x120] sm:%s222]
                %268 = vst [vmem:[%s230 + $0x90] sm:%s222] %v267
                %v269 = vld [vmem:[%s229 + $0x130] sm:%s222]
                %270 = vst [vmem:[%s230 + $0x98] sm:%s222] %v269
                %v271 = vld [vmem:[%s229 + $0x140] sm:%s222]
                %272 = vst [vmem:[%s230 + $0xa0] sm:%s222] %v271
                %v273 = vld [vmem:[%s229 + $0x150] sm:%s222]
                %274 = vst [vmem:[%s230 + $0xa8] sm:%s222] %v273
                %v275 = vld [vmem:[%s229 + $0x160] sm:%s222]
                %276 = vst [vmem:[%s230 + $0xb0] sm:%s222] %v275
                %v277 = vld [vmem:[%s229 + $0x170] sm:%s222]
                %278 = vst [vmem:[%s230 + $0xb8] sm:%s222] %v277
                %v279 = vld [vmem:[%s229 + $0x180] sm:%s222]
                %280 = vst [vmem:[%s230 + $0xc0] sm:%s222] %v279
                %v281 = vld [vmem:[%s229 + $0x190] sm:%s222]
                %282 = vst [vmem:[%s230 + $0xc8] sm:%s222] %v281
                %v283 = vld [vmem:[%s229 + $0x1a0] sm:%s222]
                %284 = vst [vmem:[%s230 + $0xd0] sm:%s222] %v283
                %v285 = vld [vmem:[%s229 + $0x1b0] sm:%s222]
                %286 = vst [vmem:[%s230 + $0xd8] sm:%s222] %v285
                %v287 = vld [vmem:[%s229 + $0x1c0] sm:%s222]
                %288 = vst [vmem:[%s230 + $0xe0] sm:%s222] %v287
                %v289 = vld [vmem:[%s229 + $0x1d0] sm:%s222]
                %290 = vst [vmem:[%s230 + $0xe8] sm:%s222] %v289
                %v291 = vld [vmem:[%s229 + $0x1e0] sm:%s222]
                %292 = vst [vmem:[%s230 + $0xf0] sm:%s222] %v291
                %v293 = vld [vmem:[%s229 + $0x1f0] sm:%s222]
                %294 = vst [vmem:[%s230 + $0xf8] sm:%s222] %v293
                %v295 = vld [vmem:[%s229 + $0x200] sm:%s222]
                %296 = vst [vmem:[%s230 + $0x100] sm:%s222] %v295
                %v297 = vld [vmem:[%s229 + $0x210] sm:%s222]
                %298 = vst [vmem:[%s230 + $0x108] sm:%s222] %v297
                %v299 = vld [vmem:[%s229 + $0x220] sm:%s222]
                %300 = vst [vmem:[%s230 + $0x110] sm:%s222] %v299
                %v301 = vld [vmem:[%s229 + $0x230] sm:%s222]
                %302 = vst [vmem:[%s230 + $0x118] sm:%s222] %v301
                %v303 = vld [vmem:[%s229 + $0x240] sm:%s222]
                %304 = vst [vmem:[%s230 + $0x120] sm:%s222] %v303
                %v305 = vld [vmem:[%s229 + $0x250] sm:%s222]
                %306 = vst [vmem:[%s230 + $0x128] sm:%s222] %v305
                %v307 = vld [vmem:[%s229 + $0x260] sm:%s222]
                %308 = vst [vmem:[%s230 + $0x130] sm:%s222] %v307
                %v309 = vld [vmem:[%s229 + $0x270] sm:%s222]
                %310 = vst [vmem:[%s230 + $0x138] sm:%s222] %v309
                %v311 = vld [vmem:[%s229 + $0x280] sm:%s222]
                %312 = vst [vmem:[%s230 + $0x140] sm:%s222] %v311
                %v313 = vld [vmem:[%s229 + $0x290] sm:%s222]
                %314 = vst [vmem:[%s230 + $0x148] sm:%s222] %v313
                %v315 = vld [vmem:[%s229 + $0x2a0] sm:%s222]
                %316 = vst [vmem:[%s230 + $0x150] sm:%s222] %v315
                %v317 = vld [vmem:[%s229 + $0x2b0] sm:%s222]
                %318 = vst [vmem:[%s230 + $0x158] sm:%s222] %v317
                %v319 = vld [vmem:[%s229 + $0x2c0] sm:%s222]
                %320 = vst [vmem:[%s230 + $0x160] sm:%s222] %v319
                %v321 = vld [vmem:[%s229 + $0x2d0] sm:%s222]
                %322 = vst [vmem:[%s230 + $0x168] sm:%s222] %v321
                %v323 = vld [vmem:[%s229 + $0x2e0] sm:%s222]
                %324 = vst [vmem:[%s230 + $0x170] sm:%s222] %v323
                %v325 = vld [vmem:[%s229 + $0x2f0] sm:%s222]
                %326 = vst [vmem:[%s230 + $0x178] sm:%s222] %v325
                %v327 = vld [vmem:[%s229 + $0x300] sm:%s222]
                %328 = vst [vmem:[%s230 + $0x180] sm:%s222] %v327
                %v329 = vld [vmem:[%s229 + $0x310] sm:%s222]
                %330 = vst [vmem:[%s230 + $0x188] sm:%s222] %v329
                %v331 = vld [vmem:[%s229 + $0x320] sm:%s222]
                %332 = vst [vmem:[%s230 + $0x190] sm:%s222] %v331
                %v333 = vld [vmem:[%s229 + $0x330] sm:%s222]
                %334 = vst [vmem:[%s230 + $0x198] sm:%s222] %v333
                %v335 = vld [vmem:[%s229 + $0x340] sm:%s222]
                %336 = vst [vmem:[%s230 + $0x1a0] sm:%s222] %v335
                %v337 = vld [vmem:[%s229 + $0x350] sm:%s222]
                %338 = vst [vmem:[%s230 + $0x1a8] sm:%s222] %v337
                %v339 = vld [vmem:[%s229 + $0x360] sm:%s222]
                %340 = vst [vmem:[%s230 + $0x1b0] sm:%s222] %v339
                %v341 = vld [vmem:[%s229 + $0x370] sm:%s222]
                %342 = vst [vmem:[%s230 + $0x1b8] sm:%s222] %v341
                %v343 = vld [vmem:[%s229 + $0x380] sm:%s222]
                %344 = vst [vmem:[%s230 + $0x1c0] sm:%s222] %v343
                %v345 = vld [vmem:[%s229 + $0x390] sm:%s222]
                %346 = vst [vmem:[%s230 + $0x1c8] sm:%s222] %v345
                %v347 = vld [vmem:[%s229 + $0x3a0] sm:%s222]
                %348 = vst [vmem:[%s230 + $0x1d0] sm:%s222] %v347
                %v349 = vld [vmem:[%s229 + $0x3b0] sm:%s222]
                %350 = vst [vmem:[%s230 + $0x1d8] sm:%s222] %v349
                %v351 = vld [vmem:[%s229 + $0x3c0] sm:%s222]
                %352 = vst [vmem:[%s230 + $0x1e0] sm:%s222] %v351
                %v353 = vld [vmem:[%s229 + $0x3d0] sm:%s222]
                %354 = vst [vmem:[%s230 + $0x1e8] sm:%s222] %v353
                %v355 = vld [vmem:[%s229 + $0x3e0] sm:%s222]
                %356 = vst [vmem:[%s230 + $0x1f0] sm:%s222] %v355
                %v357 = vld [vmem:[%s229 + $0x3f0] sm:%s222]
                %358 = vst [vmem:[%s230 + $0x1f8] sm:%s222] %v357
              $region45: #{fused_mlp.1} parent=39 // loop_footer
                %s228 = sadd.s32 1, %s224
              $region46: #{fused_mlp.1} parent=39 // loop_footer_branch
                %223 = sbr.rel target = $region42
              $region47: #{fused_mlp.1} parent=39 // loop_exit
                _
            $region40: #{fused_mlp.1} parent=31 // pred_fallthru
              _
          $region32: #{fused_mlp.1} parent=27 // pred_fallthru
            _
          %499 = vnop
        $region28: #{fused_mlp.1} parent=23 // pred_fallthru
          _
        // Predicated region
        $region63: #{fused_mlp.1} parent=23 // pred_check
          %p500 = pneg %p96
        $region64: #{fused_mlp.1} parent=23 // pred_check_branch
          %502 = sbr.rel (%p500) target = $region66
        $region65: #{fused_mlp.1} parent=23 // pred_region
          %s503 = smul.u32 2, %s20
          %p504 = scmp.lt.s32.totalorder %s503, 3
          %s505 = scalar_select %p504, %s503, 3
          %s506 = scalar_lea.vmem %s2, %s505
          %s507 = smul.u32 2, %s20
        $region66: #{fused_mlp.1} parent=23 // pred_fallthru
          _
        // Predicated region
        $region67: #{fused_mlp.1} parent=23 // pred_check
          %p508 = pneg %p122
        $region68: #{fused_mlp.1} parent=23 // pred_check_branch
          %510 = sbr.rel (%p508) target = $region70
        $region69: #{fused_mlp.1} parent=23 // pred_region
          %s511 = smul.u32 32, %s20
          %p512 = scmp.lt.s32.totalorder %s511, 63
          %s513 = scalar_select %p512, %s511, 63
          %s514 = smul.addr %s513, 4
          %s515 = scalar_lea.vmem %s3, %s514
          %s516 = smul.u32 32, %s20
        $region70: #{fused_mlp.1} parent=23 // pred_fallthru
          _
      $region24: #{fused_mlp.1} parent=5 // pred_fallthru
        _
      %p517 = scmp.le.s32.totalorder 1, %s12
      %p518 = scmp.lt.s32.totalorder %s12, 3
      %p519 = pnand %p517, %p518
      %p520 = pneg %p519
      // Predicated region
      $region71: #{fused_mlp.1} parent=5 // pred_check
        _
      $region72: #{fused_mlp.1} parent=5 // pred_check_branch
        %522 = sbr.rel (%p519) target = $region74
      $region73: #{fused_mlp.1} parent=5 // pred_region
        %s523 = ssub.s32 %s12, 1
        %s524 = sand.u32 %s63, 1
        %s525 = sand.u32 %s63, 1
        %s526 = smul.addr %s525, 512
        %s527 = scalar_lea.vmem [#allocation2], %s526
        // Predicated region
        $region75: #{fused_mlp.1} parent=73 // pred_check
          %p528 = pneg %p76
        $region76: #{fused_mlp.1} parent=73 // pred_check_branch
          %530 = sbr.rel (%p528) target = $region78
        $region77: #{fused_mlp.1} parent=73 // pred_region
          _
        $region78: #{fused_mlp.1} parent=73 // pred_fallthru
          _
        %p531 = scmp.lt.s32.totalorder %s21, 0
        %s532 = scalar_select %p531, %s21, 0
        %s533 = smul.addr %s532, 4
        %s534 = smul.addr %s533, 4
        %s535 = scalar_lea.vmem %s0, %s534
        %p536 = pneg %p50
        %p537 = pneg %p47
        %s538 = sand.u32 %s63, 1
        %s539 = sand.u32 %s63, 1
        %s540 = smul.addr %s539, 512
        %s541 = scalar_lea.vmem [#allocation2], %s540
        %p542 = pneg %p76
        %p543 = pneg %p73
        %s544 = smul.u32 2, %s22
        %p545 = scmp.lt.s32.totalorder %s544, 3
        %s546 = scalar_select %p545, %s544, 3
        %s547 = scalar_lea.vmem %s2, %s546
        %p548 = pneg %p102
        %p549 = pneg %p99
        %s550 = smul.u32 32, %s22
        %p551 = scmp.lt.s32.totalorder %s550, 63
        %s552 = scalar_select %p551, %s550, 63
        %s553 = smul.addr %s552, 4
        %s554 = scalar_lea.vmem %s3, %s553
        %p555 = pneg %p128
        %p556 = pneg %p125
        %p557 = pneg %p149
        %p558 = pneg %p146
        %p559 = pneg %p175
        %p560 = pneg %p172
        %p561 = scmp.lt.s32.totalorder %s21, 0
        %s562 = scalar_select %p561, %s21, 0
        %s563 = smul.addr %s562, 4
        %s564 = smul.addr %s563, 4
        %s565 = scalar_lea.vmem %s0, %s564
        %s566 = smul.u32 2, %s22
        %s567 = smul.u32 2, %s22
        %p568 = scmp.lt.s32.totalorder %s567, 3
        %s569 = scalar_select %p568, %s567, 3
        %s570 = scalar_lea.vmem %s2, %s569
        %s571 = smul.u32 2, %s22
        %s572 = smul.u32 32, %s22
        %p573 = scmp.lt.s32.totalorder %s572, 63
        %s574 = scalar_select %p573, %s572, 63
        %s575 = smul.addr %s574, 4
        %s576 = scalar_lea.vmem %s3, %s575
        %s577 = smul.u32 32, %s22
        %v578 = vld [vmem:[%s527] sm:$0xff]
        %v579 = vld [vmem:[%s527 + $0x8] sm:$0xff]
        %v580 = vld [vmem:[%s527 + $0x10] sm:$0xff]
        %v581 = vld [vmem:[%s527 + $0x18] sm:$0xff]
        %v582 = vld [vmem:[%s527 + $0x20] sm:$0xff]
        %v583 = vld [vmem:[%s527 + $0x28] sm:$0xff]
        %v584 = vld [vmem:[%s527 + $0x30] sm:$0xff]
        %v585 = vld [vmem:[%s527 + $0x38] sm:$0xff]
        %v586 = vld [vmem:[%s527 + $0x40] sm:$0xff]
        %v587 = vld [vmem:[%s527 + $0x48] sm:$0xff]
        %v588 = vld [vmem:[%s527 + $0x50] sm:$0xff]
        %v589 = vld [vmem:[%s527 + $0x58] sm:$0xff]
        %v590 = vld [vmem:[%s527 + $0x60] sm:$0xff]
        %v591 = vld [vmem:[%s527 + $0x68] sm:$0xff]
        %v592 = vld [vmem:[%s527 + $0x70] sm:$0xff]
        %v593 = vld [vmem:[%s527 + $0x78] sm:$0xff]
        %v594 = vld [vmem:[%s527 + $0x80] sm:$0xff]
        %v595 = vld [vmem:[%s527 + $0x88] sm:$0xff]
        %v596 = vld [vmem:[%s527 + $0x90] sm:$0xff]
        %v597 = vld [vmem:[%s527 + $0x98] sm:$0xff]
        %v598 = vld [vmem:[%s527 + $0xa0] sm:$0xff]
        %v599 = vld [vmem:[%s527 + $0xa8] sm:$0xff]
        %v600 = vld [vmem:[%s527 + $0xb0] sm:$0xff]
        %v601 = vld [vmem:[%s527 + $0xb8] sm:$0xff]
        %v602 = vld [vmem:[%s527 + $0xc0] sm:$0xff]
        %v603 = vld [vmem:[%s527 + $0xc8] sm:$0xff]
        %v604 = vld [vmem:[%s527 + $0xd0] sm:$0xff]
        %v605 = vld [vmem:[%s527 + $0xd8] sm:$0xff]
        %v606 = vld [vmem:[%s527 + $0xe0] sm:$0xff]
        %v607 = vld [vmem:[%s527 + $0xe8] sm:$0xff]
        %v608 = vld [vmem:[%s527 + $0xf0] sm:$0xff]
        %v609 = vld [vmem:[%s527 + $0xf8] sm:$0xff]
        %v610 = vld [vmem:[%s527 + $0x100] sm:$0xff]
        %v611 = vld [vmem:[%s527 + $0x108] sm:$0xff]
        %v612 = vld [vmem:[%s527 + $0x110] sm:$0xff]
        %v613 = vld [vmem:[%s527 + $0x118] sm:$0xff]
        %v614 = vld [vmem:[%s527 + $0x120] sm:$0xff]
        %v615 = vld [vmem:[%s527 + $0x128] sm:$0xff]
        %v616 = vld [vmem:[%s527 + $0x130] sm:$0xff]
        %v617 = vld [vmem:[%s527 + $0x138] sm:$0xff]
        %v618 = vld [vmem:[%s527 + $0x140] sm:$0xff]
        %v619 = vld [vmem:[%s527 + $0x148] sm:$0xff]
        %v620 = vld [vmem:[%s527 + $0x150] sm:$0xff]
        %v621 = vld [vmem:[%s527 + $0x158] sm:$0xff]
        %v622 = vld [vmem:[%s527 + $0x160] sm:$0xff]
        %v623 = vld [vmem:[%s527 + $0x168] sm:$0xff]
        %v624 = vld [vmem:[%s527 + $0x170] sm:$0xff]
        %v625 = vld [vmem:[%s527 + $0x178] sm:$0xff]
        %v626 = vld [vmem:[%s527 + $0x180] sm:$0xff]
        %v627 = vld [vmem:[%s527 + $0x188] sm:$0xff]
        %v628 = vld [vmem:[%s527 + $0x190] sm:$0xff]
        %v629 = vld [vmem:[%s527 + $0x198] sm:$0xff]
        %v630 = vld [vmem:[%s527 + $0x1a0] sm:$0xff]
        %v631 = vld [vmem:[%s527 + $0x1a8] sm:$0xff]
        %v632 = vld [vmem:[%s527 + $0x1b0] sm:$0xff]
        %v633 = vld [vmem:[%s527 + $0x1b8] sm:$0xff]
        %v634 = vld [vmem:[%s527 + $0x1c0] sm:$0xff]
        %v635 = vld [vmem:[%s527 + $0x1c8] sm:$0xff]
        %v636 = vld [vmem:[%s527 + $0x1d0] sm:$0xff]
        %v637 = vld [vmem:[%s527 + $0x1d8] sm:$0xff]
        %v638 = vld [vmem:[%s527 + $0x1e0] sm:$0xff]
        %v639 = vld [vmem:[%s527 + $0x1e8] sm:$0xff]
        %v640 = vld [vmem:[%s527 + $0x1f0] sm:$0xff]
        %v641 = vld [vmem:[%s527 + $0x1f8] sm:$0xff]
        %v642 = vld [vmem:[%s565] sm:$0xff]
        %v643 = vld [vmem:[%s565 + $0x8] sm:$0xff]
        %v644 = vld [vmem:[%s570] sm:$0x3]
        %v646 = vperm.slane %v644, 0
        %v647 = vperm.slane %v644, 1
        %v652 = vunpack.c.l.b16 %v642
        %v653 = vunpack.c.h.b16 %v642
        %v654 = vunpack.c.l.b16 %v643
        %v655 = vunpack.c.h.b16 %v643
        %v656 = vpack.c.b16 %v652, %v652
        %v657 = vpack.c.b16 %v653, %v653
        %v658 = vpack.c.b16 %v654, %v654
        %v659 = vpack.c.b16 %v655, %v655
        %v728 = vunpack.c.l.b16 %v578
        %v729 = vunpack.c.h.b16 %v578
        %v730 = vunpack.c.l.b16 %v579
        %v731 = vunpack.c.h.b16 %v579
        %v732 = vunpack.c.l.b16 %v580
        %v733 = vunpack.c.h.b16 %v580
        %v734 = vunpack.c.l.b16 %v581
        %v735 = vunpack.c.h.b16 %v581
        %v736 = vunpack.c.l.b16 %v582
        %v737 = vunpack.c.h.b16 %v582
        %v738 = vunpack.c.l.b16 %v583
        %v739 = vunpack.c.h.b16 %v583
        %v740 = vunpack.c.l.b16 %v584
        %v741 = vunpack.c.h.b16 %v584
        %v742 = vunpack.c.l.b16 %v585
        %v743 = vunpack.c.h.b16 %v585
        %v744 = vunpack.c.l.b16 %v586
        %v745 = vunpack.c.h.b16 %v586
        %v746 = vunpack.c.l.b16 %v587
        %v747 = vunpack.c.h.b16 %v587
        %v748 = vunpack.c.l.b16 %v588
        %v749 = vunpack.c.h.b16 %v588
        %v750 = vunpack.c.l.b16 %v589
        %v751 = vunpack.c.h.b16 %v589
        %v752 = vunpack.c.l.b16 %v590
        %v753 = vunpack.c.h.b16 %v590
        %v754 = vunpack.c.l.b16 %v591
        %v755 = vunpack.c.h.b16 %v591
        %v756 = vunpack.c.l.b16 %v592
        %v757 = vunpack.c.h.b16 %v592
        %v758 = vunpack.c.l.b16 %v593
        %v759 = vunpack.c.h.b16 %v593
        %v760 = vunpack.c.l.b16 %v594
        %v761 = vunpack.c.h.b16 %v594
        %v762 = vunpack.c.l.b16 %v595
        %v763 = vunpack.c.h.b16 %v595
        %v764 = vunpack.c.l.b16 %v596
        %v765 = vunpack.c.h.b16 %v596
        %v766 = vunpack.c.l.b16 %v597
        %v767 = vunpack.c.h.b16 %v597
        %v768 = vunpack.c.l.b16 %v598
        %v769 = vunpack.c.h.b16 %v598
        %v770 = vunpack.c.l.b16 %v599
        %v771 = vunpack.c.h.b16 %v599
        %v772 = vunpack.c.l.b16 %v600
        %v773 = vunpack.c.h.b16 %v600
        %v774 = vunpack.c.l.b16 %v601
        %v775 = vunpack.c.h.b16 %v601
        %v776 = vunpack.c.l.b16 %v602
        %v777 = vunpack.c.h.b16 %v602
        %v778 = vunpack.c.l.b16 %v603
        %v779 = vunpack.c.h.b16 %v603
        %v780 = vunpack.c.l.b16 %v604
        %v781 = vunpack.c.h.b16 %v604
        %v782 = vunpack.c.l.b16 %v605
        %v783 = vunpack.c.h.b16 %v605
        %v784 = vunpack.c.l.b16 %v606
        %v785 = vunpack.c.h.b16 %v606
        %v786 = vunpack.c.l.b16 %v607
        %v787 = vunpack.c.h.b16 %v607
        %v788 = vunpack.c.l.b16 %v608
        %v789 = vunpack.c.h.b16 %v608
        %v790 = vunpack.c.l.b16 %v609
        %v791 = vunpack.c.h.b16 %v609
        %v792 = vunpack.c.l.b16 %v610
        %v793 = vunpack.c.h.b16 %v610
        %v794 = vunpack.c.l.b16 %v611
        %v795 = vunpack.c.h.b16 %v611
        %v796 = vunpack.c.l.b16 %v612
        %v797 = vunpack.c.h.b16 %v612
        %v798 = vunpack.c.l.b16 %v613
        %v799 = vunpack.c.h.b16 %v613
        %v800 = vunpack.c.l.b16 %v614
        %v801 = vunpack.c.h.b16 %v614
        %v802 = vunpack.c.l.b16 %v615
        %v803 = vunpack.c.h.b16 %v615
        %v804 = vunpack.c.l.b16 %v616
        %v805 = vunpack.c.h.b16 %v616
        %v806 = vunpack.c.l.b16 %v617
        %v807 = vunpack.c.h.b16 %v617
        %v808 = vunpack.c.l.b16 %v618
        %v809 = vunpack.c.h.b16 %v618
        %v810 = vunpack.c.l.b16 %v619
        %v811 = vunpack.c.h.b16 %v619
        %v812 = vunpack.c.l.b16 %v620
        %v813 = vunpack.c.h.b16 %v620
        %v814 = vunpack.c.l.b16 %v621
        %v815 = vunpack.c.h.b16 %v621
        %v816 = vunpack.c.l.b16 %v622
        %v817 = vunpack.c.h.b16 %v622
        %v818 = vunpack.c.l.b16 %v623
        %v819 = vunpack.c.h.b16 %v623
        %v820 = vunpack.c.l.b16 %v624
        %v821 = vunpack.c.h.b16 %v624
        %v822 = vunpack.c.l.b16 %v625
        %v823 = vunpack.c.h.b16 %v625
        %v824 = vunpack.c.l.b16 %v626
        %v825 = vunpack.c.h.b16 %v626
        %v826 = vunpack.c.l.b16 %v627
        %v827 = vunpack.c.h.b16 %v627
        %v828 = vunpack.c.l.b16 %v628
        %v829 = vunpack.c.h.b16 %v628
        %v830 = vunpack.c.l.b16 %v629
        %v831 = vunpack.c.h.b16 %v629
        %v832 = vunpack.c.l.b16 %v630
        %v833 = vunpack.c.h.b16 %v630
        %v834 = vunpack.c.l.b16 %v631
        %v835 = vunpack.c.h.b16 %v631
        %v836 = vunpack.c.l.b16 %v632
        %v837 = vunpack.c.h.b16 %v632
        %v838 = vunpack.c.l.b16 %v633
        %v839 = vunpack.c.h.b16 %v633
        %v840 = vunpack.c.l.b16 %v634
        %v841 = vunpack.c.h.b16 %v634
        %v842 = vunpack.c.l.b16 %v635
        %v843 = vunpack.c.h.b16 %v635
        %v844 = vunpack.c.l.b16 %v636
        %v845 = vunpack.c.h.b16 %v636
        %v846 = vunpack.c.l.b16 %v637
        %v847 = vunpack.c.h.b16 %v637
        %v848 = vunpack.c.l.b16 %v638
        %v849 = vunpack.c.h.b16 %v638
        %v850 = vunpack.c.l.b16 %v639
        %v851 = vunpack.c.h.b16 %v639
        %v852 = vunpack.c.l.b16 %v640
        %v853 = vunpack.c.h.b16 %v640
        %v854 = vunpack.c.l.b16 %v641
        %v855 = vunpack.c.h.b16 %v641
        %v856 = vpack.c.b16 %v730, %v728
        %v857 = vpack.c.b16 %v731, %v729
        %v858 = vpack.c.b16 %v734, %v732
        %v859 = vpack.c.b16 %v735, %v733
        %v860 = vpack.c.b16 %v738, %v736
        %v861 = vpack.c.b16 %v739, %v737
        %v862 = vpack.c.b16 %v742, %v740
        %v863 = vpack.c.b16 %v743, %v741
        %v864 = vpack.c.b16 %v746, %v744
        %v865 = vpack.c.b16 %v747, %v745
        %v866 = vpack.c.b16 %v750, %v748
        %v867 = vpack.c.b16 %v751, %v749
        %v868 = vpack.c.b16 %v754, %v752
        %v869 = vpack.c.b16 %v755, %v753
        %v870 = vpack.c.b16 %v758, %v756
        %v871 = vpack.c.b16 %v759, %v757
        %v872 = vpack.c.b16 %v762, %v760
        %v873 = vpack.c.b16 %v763, %v761
        %v874 = vpack.c.b16 %v766, %v764
        %v875 = vpack.c.b16 %v767, %v765
        %v876 = vpack.c.b16 %v770, %v768
        %v877 = vpack.c.b16 %v771, %v769
        %v878 = vpack.c.b16 %v774, %v772
        %v879 = vpack.c.b16 %v775, %v773
        %v880 = vpack.c.b16 %v778, %v776
        %v881 = vpack.c.b16 %v779, %v777
        %v882 = vpack.c.b16 %v782, %v780
        %v883 = vpack.c.b16 %v783, %v781
        %v884 = vpack.c.b16 %v786, %v784
        %v885 = vpack.c.b16 %v787, %v785
        %v886 = vpack.c.b16 %v790, %v788
        %v887 = vpack.c.b16 %v791, %v789
        %v888 = vpack.c.b16 %v794, %v792
        %v889 = vpack.c.b16 %v795, %v793
        %v890 = vpack.c.b16 %v798, %v796
        %v891 = vpack.c.b16 %v799, %v797
        %v892 = vpack.c.b16 %v802, %v800
        %v893 = vpack.c.b16 %v803, %v801
        %v894 = vpack.c.b16 %v806, %v804
        %v895 = vpack.c.b16 %v807, %v805
        %v896 = vpack.c.b16 %v810, %v808
        %v897 = vpack.c.b16 %v811, %v809
        %v898 = vpack.c.b16 %v814, %v812
        %v899 = vpack.c.b16 %v815, %v813
        %v900 = vpack.c.b16 %v818, %v816
        %v901 = vpack.c.b16 %v819, %v817
        %v902 = vpack.c.b16 %v822, %v820
        %v903 = vpack.c.b16 %v823, %v821
        %v904 = vpack.c.b16 %v826, %v824
        %v905 = vpack.c.b16 %v827, %v825
        %v906 = vpack.c.b16 %v830, %v828
        %v907 = vpack.c.b16 %v831, %v829
        %v908 = vpack.c.b16 %v834, %v832
        %v909 = vpack.c.b16 %v835, %v833
        %v910 = vpack.c.b16 %v838, %v836
        %v911 = vpack.c.b16 %v839, %v837
        %v912 = vpack.c.b16 %v842, %v840
        %v913 = vpack.c.b16 %v843, %v841
        %v914 = vpack.c.b16 %v846, %v844
        %v915 = vpack.c.b16 %v847, %v845
        %v916 = vpack.c.b16 %v850, %v848
        %v917 = vpack.c.b16 %v851, %v849
        %v918 = vpack.c.b16 %v854, %v852
        %v919 = vpack.c.b16 %v855, %v853
        %984 = vmatpush.bf16.msra.mxu0 %v870
        %985 = vmatpush.bf16.msra.mxu0 %v868
        %986 = vmatpush.bf16.msra.mxu0 %v866
        %987 = vmatpush.bf16.msra.mxu0 %v864
        %988 = vmatpush.bf16.msra.mxu0 %v862
        %989 = vmatpush.bf16.msra.mxu0 %v860
        %990 = vmatpush.bf16.msra.mxu0 %v858
        %991 = vmatpush.bf16.msra.mxu0 %v856
        %992 = vmatmul.bf16.gmra.mxu0 %v656
        %v993 = vpop.f32.mrf.mxu0
        %v994 = vadd.f32 %v646, %v993
        %v995 = vpop.f32.mrf.mxu0
        %996 = vdwg.mxu0
        %997 = vmatpush.bf16.msra.mxu0 %v886
        %998 = vmatpush.bf16.msra.mxu0 %v884
        %999 = vmatpush.bf16.msra.mxu0 %v882
        %1000 = vmatpush.bf16.msra.mxu0 %v880
        %1001 = vmatpush.bf16.msra.mxu0 %v878
        %1002 = vmatpush.bf16.msra.mxu0 %v876
        %1003 = vmatpush.bf16.msra.mxu0 %v874
        %1004 = vmatpush.bf16.msra.mxu0 %v872
        %1005 = vmatmul.bf16.gmra.mxu0 %v657
        %v1006 = vpop.f32.mrf.mxu0
        %v1007 = vadd.f32 %v994, %v1006
        %v1008 = vpop.f32.mrf.mxu0
        %1009 = vdwg.mxu0
        %1010 = vmatpush.bf16.msra.mxu0 %v902
        %1011 = vmatpush.bf16.msra.mxu0 %v900
        %1012 = vmatpush.bf16.msra.mxu0 %v898
        %1013 = vmatpush.bf16.msra.mxu0 %v896
        %1014 = vmatpush.bf16.msra.mxu0 %v894
        %1015 = vmatpush.bf16.msra.mxu0 %v892
        %1016 = vmatpush.bf16.msra.mxu0 %v890
        %1017 = vmatpush.bf16.msra.mxu0 %v888
        %1018 = vmatmul.bf16.gmra.mxu0 %v658
        %v1019 = vpop.f32.mrf.mxu0
        %v1020 = vadd.f32 %v1007, %v1019
        %v1021 = vpop.f32.mrf.mxu0
        %1022 = vdwg.mxu0
        %1023 = vmatpush.bf16.msra.mxu0 %v918
        %1024 = vmatpush.bf16.msra.mxu0 %v916
        %1025 = vmatpush.bf16.msra.mxu0 %v914
        %1026 = vmatpush.bf16.msra.mxu0 %v912
        %1027 = vmatpush.bf16.msra.mxu0 %v910
        %1028 = vmatpush.bf16.msra.mxu0 %v908
        %1029 = vmatpush.bf16.msra.mxu0 %v906
        %1030 = vmatpush.bf16.msra.mxu0 %v904
        %1031 = vmatmul.bf16.gmra.mxu0 %v659
        %v1032 = vpop.f32.mrf.mxu0
        %v1033 = vadd.f32 %v1020, %v1032
        %v1034 = vpop.f32.mrf.mxu0
        %1035 = vdwg.mxu0
        %1036 = vmatpush.bf16.msra.mxu0 %v871
        %1037 = vmatpush.bf16.msra.mxu0 %v869
        %1038 = vmatpush.bf16.msra.mxu0 %v867
        %1039 = vmatpush.bf16.msra.mxu0 %v865
        %1040 = vmatpush.bf16.msra.mxu0 %v863
        %1041 = vmatpush.bf16.msra.mxu0 %v861
        %1042 = vmatpush.bf16.msra.mxu0 %v859
        %1043 = vmatpush.bf16.msra.mxu0 %v857
        %1044 = vmatmul.bf16.gmra.mxu0 %v656
        %v1045 = vpop.f32.mrf.mxu0
        %v1046 = vadd.f32 %v647, %v1045
        %v1047 = vpop.f32.mrf.mxu0
        %1048 = vdwg.mxu0
        %1049 = vmatpush.bf16.msra.mxu0 %v887
        %1050 = vmatpush.bf16.msra.mxu0 %v885
        %1051 = vmatpush.bf16.msra.mxu0 %v883
        %1052 = vmatpush.bf16.msra.mxu0 %v881
        %1053 = vmatpush.bf16.msra.mxu0 %v879
        %1054 = vmatpush.bf16.msra.mxu0 %v877
        %1055 = vmatpush.bf16.msra.mxu0 %v875
        %1056 = vmatpush.bf16.msra.mxu0 %v873
        %1057 = vmatmul.bf16.gmra.mxu0 %v657
        %v1058 = vpop.f32.mrf.mxu0
        %v1059 = vadd.f32 %v1046, %v1058
        %v1060 = vpop.f32.mrf.mxu0
        %1061 = vdwg.mxu0
        %1062 = vmatpush.bf16.msra.mxu0 %v903
        %1063 = vmatpush.bf16.msra.mxu0 %v901
        %1064 = vmatpush.bf16.msra.mxu0 %v899
        %1065 = vmatpush.bf16.msra.mxu0 %v897
        %1066 = vmatpush.bf16.msra.mxu0 %v895
        %1067 = vmatpush.bf16.msra.mxu0 %v893
        %1068 = vmatpush.bf16.msra.mxu0 %v891
        %1069 = vmatpush.bf16.msra.mxu0 %v889
        %1070 = vmatmul.bf16.gmra.mxu0 %v658
        %v1071 = vpop.f32.mrf.mxu0
        %v1072 = vadd.f32 %v1059, %v1071
        %v1073 = vpop.f32.mrf.mxu0
        %1074 = vdwg.mxu0
        %1075 = vmatpush.bf16.msra.mxu0 %v919
        %1076 = vmatpush.bf16.msra.mxu0 %v917
        %1077 = vmatpush.bf16.msra.mxu0 %v915
        %1078 = vmatpush.bf16.msra.mxu0 %v913
        %1079 = vmatpush.bf16.msra.mxu0 %v911
        %1080 = vmatpush.bf16.msra.mxu0 %v909
        %1081 = vmatpush.bf16.msra.mxu0 %v907
        %1082 = vmatpush.bf16.msra.mxu0 %v905
        %1083 = vmatmul.bf16.gmra.mxu0 %v659
        %v1084 = vpop.f32.mrf.mxu0
        %v1085 = vadd.f32 %v1072, %v1084
        %v1086 = vpop.f32.mrf.mxu0
        %1087 = vdwg.mxu0
        %v1088 = vmax.f32 %v1033, 0.0
        %v1089 = vmax.f32 %v1085, 0.0
        %v1090 = vpack.c.bf16 %v1088, %v1088
        %v1091 = vpack.c.bf16 %v1089, %v1089
        %v1092 = vld [vmem:[%s576] sm:$0xf]
        %v1093 = vld [vmem:[%s576 + $0x4] sm:$0xf]
        %v1094 = vld [vmem:[%s576 + $0x8] sm:$0xf]
        %v1095 = vld [vmem:[%s576 + $0xc] sm:$0xf]
        %v1096 = vld [vmem:[%s576 + $0x10] sm:$0xf]
        %v1097 = vld [vmem:[%s576 + $0x14] sm:$0xf]
        %v1098 = vld [vmem:[%s576 + $0x18] sm:$0xf]
        %v1099 = vld [vmem:[%s576 + $0x1c] sm:$0xf]
        %v1100 = vld [vmem:[%s576 + $0x20] sm:$0xf]
        %v1101 = vld [vmem:[%s576 + $0x24] sm:$0xf]
        %v1102 = vld [vmem:[%s576 + $0x28] sm:$0xf]
        %v1103 = vld [vmem:[%s576 + $0x2c] sm:$0xf]
        %v1104 = vld [vmem:[%s576 + $0x30] sm:$0xf]
        %v1105 = vld [vmem:[%s576 + $0x34] sm:$0xf]
        %v1106 = vld [vmem:[%s576 + $0x38] sm:$0xf]
        %v1107 = vld [vmem:[%s576 + $0x3c] sm:$0xf]
        %v1108 = vld [vmem:[%s576 + $0x40] sm:$0xf]
        %v1109 = vld [vmem:[%s576 + $0x44] sm:$0xf]
        %v1110 = vld [vmem:[%s576 + $0x48] sm:$0xf]
        %v1111 = vld [vmem:[%s576 + $0x4c] sm:$0xf]
        %v1112 = vld [vmem:[%s576 + $0x50] sm:$0xf]
        %v1113 = vld [vmem:[%s576 + $0x54] sm:$0xf]
        %v1114 = vld [vmem:[%s576 + $0x58] sm:$0xf]
        %v1115 = vld [vmem:[%s576 + $0x5c] sm:$0xf]
        %v1116 = vld [vmem:[%s576 + $0x60] sm:$0xf]
        %v1117 = vld [vmem:[%s576 + $0x64] sm:$0xf]
        %v1118 = vld [vmem:[%s576 + $0x68] sm:$0xf]
        %v1119 = vld [vmem:[%s576 + $0x6c] sm:$0xf]
        %v1120 = vld [vmem:[%s576 + $0x70] sm:$0xf]
        %v1121 = vld [vmem:[%s576 + $0x74] sm:$0xf]
        %v1122 = vld [vmem:[%s576 + $0x78] sm:$0xf]
        %v1123 = vld [vmem:[%s576 + $0x7c] sm:$0xf]
        %v1156 = vunpack.c.l.b16 %v1092
        %v1157 = vunpack.c.l.b16 %v1093
        %v1158 = vunpack.c.l.b16 %v1094
        %v1159 = vunpack.c.l.b16 %v1095
        %v1160 = vunpack.c.l.b16 %v1096
        %v1161 = vunpack.c.l.b16 %v1097
        %v1162 = vunpack.c.l.b16 %v1098
        %v1163 = vunpack.c.l.b16 %v1099
        %v1164 = vunpack.c.l.b16 %v1100
        %v1165 = vunpack.c.l.b16 %v1101
        %v1166 = vunpack.c.l.b16 %v1102
        %v1167 = vunpack.c.l.b16 %v1103
        %v1168 = vunpack.c.l.b16 %v1104
        %v1169 = vunpack.c.l.b16 %v1105
        %v1170 = vunpack.c.l.b16 %v1106
        %v1171 = vunpack.c.l.b16 %v1107
        %v1172 = vunpack.c.l.b16 %v1108
        %v1173 = vunpack.c.l.b16 %v1109
        %v1174 = vunpack.c.l.b16 %v1110
        %v1175 = vunpack.c.l.b16 %v1111
        %v1176 = vunpack.c.l.b16 %v1112
        %v1177 = vunpack.c.l.b16 %v1113
        %v1178 = vunpack.c.l.b16 %v1114
        %v1179 = vunpack.c.l.b16 %v1115
        %v1180 = vunpack.c.l.b16 %v1116
        %v1181 = vunpack.c.l.b16 %v1117
        %v1182 = vunpack.c.l.b16 %v1118
        %v1183 = vunpack.c.l.b16 %v1119
        %v1184 = vunpack.c.l.b16 %v1120
        %v1185 = vunpack.c.l.b16 %v1121
        %v1186 = vunpack.c.l.b16 %v1122
        %v1187 = vunpack.c.l.b16 %v1123
        %v1188 = vpack.c.b16 %v1157, %v1156
        %v1189 = vpack.c.b16 %v1159, %v1158
        %v1190 = vpack.c.b16 %v1161, %v1160
        %v1191 = vpack.c.b16 %v1163, %v1162
        %v1192 = vpack.c.b16 %v1165, %v1164
        %v1193 = vpack.c.b16 %v1167, %v1166
        %v1194 = vpack.c.b16 %v1169, %v1168
        %v1195 = vpack.c.b16 %v1171, %v1170
        %v1196 = vpack.c.b16 %v1173, %v1172
        %v1197 = vpack.c.b16 %v1175, %v1174
        %v1198 = vpack.c.b16 %v1177, %v1176
        %v1199 = vpack.c.b16 %v1179, %v1178
        %v1200 = vpack.c.b16 %v1181, %v1180
        %v1201 = vpack.c.b16 %v1183, %v1182
        %v1202 = vpack.c.b16 %v1185, %v1184
        %v1203 = vpack.c.b16 %v1187, %v1186
        %1220 = vmatpush.bf16.msra.mxu0 %v1195
        %1221 = vmatpush.bf16.msra.mxu0 %v1194
        %1222 = vmatpush.bf16.msra.mxu0 %v1193
        %1223 = vmatpush.bf16.msra.mxu0 %v1192
        %1224 = vmatpush.bf16.msra.mxu0 %v1191
        %1225 = vmatpush.bf16.msra.mxu0 %v1190
        %1226 = vmatpush.bf16.msra.mxu0 %v1189
        %1227 = vmatpush.bf16.msra.mxu0 %v1188
        %1228 = vmatmul.bf16.gmra.mxu0 %v1090
        %v1229 = vpop.f32.mrf.mxu0
        %v1230 = vadd.f32 0.0, %v1229
        %v1231 = vpop.f32.mrf.mxu0
        %1232 = vdwg.mxu0
        %1233 = vmatpush.bf16.msra.mxu0 %v1203
        %1234 = vmatpush.bf16.msra.mxu0 %v1202
        %1235 = vmatpush.bf16.msra.mxu0 %v1201
        %1236 = vmatpush.bf16.msra.mxu0 %v1200
        %1237 = vmatpush.bf16.msra.mxu0 %v1199
        %1238 = vmatpush.bf16.msra.mxu0 %v1198
        %1239 = vmatpush.bf16.msra.mxu0 %v1197
        %1240 = vmatpush.bf16.msra.mxu0 %v1196
        %1241 = vmatmul.bf16.gmra.mxu0 %v1091
        %v1242 = vpop.f32.mrf.mxu0
        %v1243 = vadd.f32 %v1230, %v1242
        %v1244 = vpop.f32.mrf.mxu0
        %1245 = vdwg.mxu0
        %p1246 = scmp.eq.s32.totalorder %s22, 0
        // Predicated region
        $region79: #{fused_mlp.1} parent=73 // pred_check
          %p1247 = pneg %p1246
        $region80: #{fused_mlp.1} parent=73 // pred_check_branch
          %1249 = sbr.rel (%p1247) target = $region82
        $region81: #{fused_mlp.1} parent=73 // pred_region
          %v1250 = vld [vmem:[%s4] sm:$0x1]
          %v1252 = vperm.slane %v1250, 0
          %v1254 = vadd.f32 %v1243, %v1252
          %1255 = vst [vmem:[#allocation3] sm:$0xff] %v1254
        $region82: #{fused_mlp.1} parent=73 // pred_fallthru
          _
        %p1256 = scmp.gt.s32.totalorder %s22, 0
        // Predicated region
        $region83: #{fused_mlp.1} parent=73 // pred_check
          %p1257 = pneg %p1256
        $region84: #{fused_mlp.1} parent=73 // pred_check_branch
          %1259 = sbr.rel (%p1257) target = $region86
        $region85: #{fused_mlp.1} parent=73 // pred_region
          %v1260 = vld [vmem:[#allocation3] sm:$0xff]
          %v1261 = vadd.f32 %v1260, %v1243
          %1262 = vst [vmem:[#allocation3] sm:$0xff] %v1261
        $region86: #{fused_mlp.1} parent=73 // pred_fallthru
          _
        // Predicated region
        $region87: #{fused_mlp.1} parent=73 // pred_check
          %p1263 = pneg %p172
        $region88: #{fused_mlp.1} parent=73 // pred_check_branch
          %1265 = sbr.rel (%p1263) target = $region90
        $region89: #{fused_mlp.1} parent=73 // pred_region
          %1267 = vsyncadd [#allocation4], 0
          %s1268 = smul.addr %s21, 8
          %s1269 = scalar_lea.hbm %s5, %s1268
          %s1271 = sshll.u32 [#allocation3], 4
          %s1272 = int_to_ptr.vmem [resolvable:$true] %s1271
          %s1273 = sshll.u32 %s1269, 4
          %s1274 = int_to_ptr.hbm [resolvable:$true] %s1273
          %1276 = dma.vmem_to_hbm [thread:$0]  %s1272, 128, %s1274, [#allocation4]
        $region90: #{fused_mlp.1} parent=73 // pred_fallthru
          _
        // Predicated region
        $region91: #{fused_mlp.1} parent=73 // pred_check
          %p1277 = pneg %p172
        $region92: #{fused_mlp.1} parent=73 // pred_check_branch
          %1279 = sbr.rel (%p1277) target = $region94
        $region93: #{fused_mlp.1} parent=73 // pred_region
          %1281 = dma.done [#allocation4], 128
        $region94: #{fused_mlp.1} parent=73 // pred_fallthru
          _
      $region74: #{fused_mlp.1} parent=5 // pred_fallthru
        _
      %p1282 = scmp.le.s32.totalorder 2, %s12
      // Predicated region
      $region95: #{fused_mlp.1} parent=5 // pred_check
        %p1283 = pneg %p1282
      $region96: #{fused_mlp.1} parent=5 // pred_check_branch
        %1285 = sbr.rel (%p1283) target = $region98
      $region97: #{fused_mlp.1} parent=5 // pred_region
        %s1286 = ssub.s32 %s12, 2
      $region98: #{fused_mlp.1} parent=5 // pred_fallthru
        _
    $region6: #{fused_mlp.1} parent=1 // loop_footer
      %s16 = sadd.s32 1, %s12
    $region7: #{fused_mlp.1} parent=1 // loop_footer_branch
      %11 = sbr.rel target = $region3
    $region8: #{fused_mlp.1} parent=1 // loop_exit
      _
    %1287 = vsyncpa [#allocation4], 1
    %s1288 = scalar_lea.sflag [#allocation4], 1
    %1289 = vsyncpa %s1288, 1

</llo_original>
